<compile_context>
chip_gen: v7x
topology: tpu7x:2x2x1
jax: 0.10.0
libtpu: 0.0.40
codegen_flags: <defaults>
</compile_context>

<pallas_src>
import jax
import jax.numpy as jnp
import numpy as np
from jax import lax
from jax.experimental import pallas as pl
from jax.experimental.pallas import tpu as pltpu

BN_EPS = 1e-5


# ----------------------------------------------------------------------------
# Fused kernel: Linear -> BatchNorm1d(batch stats) -> ReLU -> Linear
# ----------------------------------------------------------------------------
def _soda_mlp_kernel(x_ref, w1_ref, bn_ref, w2_ref, b2_ref, o_ref):
    # Linear 1 (MXU, f32 accumulation).  b1 omitted: it cancels exactly under
    # train-mode BatchNorm (absorbed by the batch mean, no effect on var).
    h = jnp.dot(x_ref[...], w1_ref[...], preferred_element_type=jnp.float32)

    # BatchNorm1d, training-mode forward: per-feature batch mean, biased var.
    mean = jnp.mean(h, axis=0, keepdims=True)
    var = jnp.mean(jnp.square(h - mean), axis=0, keepdims=True)

    # Fold (x - mean) * rsqrt(var+eps) * gamma + beta into one scale/offset.
    gamma = bn_ref[0:1, :]
    beta = bn_ref[1:2, :]
    scale = gamma * lax.rsqrt(var + BN_EPS)          # (1, hidden_dim)
    offset = beta - mean * scale                     # (1, hidden_dim)

    # BN + ReLU in two full-tile VPU ops + max.
    hr = jnp.maximum(h * scale + offset, 0.0)

    # Linear 2 (MXU, f32 accumulation) — single lane-aligned output store.
    out = jnp.dot(hr, w2_ref[...],
                  preferred_element_type=jnp.float32) + b2_ref[...]
    o_ref[...] = out.astype(o_ref.dtype)


# ----------------------------------------------------------------------------
# Wrapper: one gridless pallas_call, whole batch + all params resident in VMEM
# ----------------------------------------------------------------------------
def soda_mlp_forward(x, params):
    n, _ = x.shape
    odim = params["w2"].shape[1]
    # Pack the tiny per-feature BN params into one (2, hidden_dim) transfer.
    bn = jnp.concatenate([params["gamma"], params["beta"]], axis=0)

    vmem_spec = pl.BlockSpec(memory_space=pltpu.MemorySpace.VMEM)
    return pl.pallas_call(
        _soda_mlp_kernel,
        out_shape=jax.ShapeDtypeStruct((n, odim), jnp.float32),
        in_specs=[vmem_spec] * 5,     # x, w1, bn(gamma|beta), w2, b2
        out_specs=vmem_spec,
    )(x, params["w1"], bn, params["w2"], params["b2"])


# ----------------------------------------------------------------------------
# Deterministic synthetic parameters + plain-JAX reference for verification
# ----------------------------------------------------------------------------
def init_params(key, projection_dim, hidden_dim, out_dim):
    # weight_init() in the original module uses orthogonal weights and zero
    # biases; values do not change the kernel semantics, so we use small random
    # (nonzero) params to exercise every term — including a nonzero b1, whose
    # exact cancellation under BN is verified against the reference.
    ks = jax.random.split(key, 6)
    return {
        "w1": 0.2 * jax.random.normal(ks[0], (projection_dim, hidden_dim),
                                      jnp.float32),
        "b1": 0.1 * jax.random.normal(ks[1], (1, hidden_dim), jnp.float32),
        "gamma": 1.0 + 0.1 * jax.random.normal(ks[2], (1, hidden_dim),
                                               jnp.float32),
        "beta": 0.1 * jax.random.normal(ks[3], (1, hidden_dim), jnp.float32),
        "w2": 0.2 * jax.random.normal(ks[4], (hidden_dim, out_dim),
                                      jnp.float32),
        "b2": 0.1 * jax.random.normal(ks[5], (1, out_dim), jnp.float32),
    }


def reference_forward(x, params):
    h = x @ params["w1"] + params["b1"]
    mean = h.mean(axis=0, keepdims=True)
    var = ((h - mean) ** 2).mean(axis=0, keepdims=True)   # biased, like torch BN
    hn = (h - mean) / jnp.sqrt(var + BN_EPS) * params["gamma"] + params["beta"]
    hr = jnp.maximum(hn, 0.0)
    return hr @ params["w2"] + params["b2"]


if __name__ == "__main__":
    key = jax.random.PRNGKey(0)
    kx, kp = jax.random.split(key)

    batch, projection_dim, hidden_dim, out_dim = 8, 32, 64, 32
    x = jax.random.normal(kx, (batch, projection_dim), jnp.float32)
    params = init_params(kp, projection_dim, hidden_dim, out_dim)

    out = jax.jit(soda_mlp_forward)(x, params)
    out = jax.block_until_ready(out)

    ref = reference_forward(x, params)
    assert out.shape == (batch, out_dim) and out.dtype == jnp.float32
    np.testing.assert_allclose(np.asarray(out), np.asarray(ref),
                               rtol=1e-4, atol=1e-4)
    print("KERNEL_OK")
</pallas_src>

<mosaic_0001>
module attributes {stable_mosaic.version = 11 : i64} {
  func.func @_soda_mlp_kernel(%arg0: memref<8x32xf32, #tpu.memory_space<vmem>>, %arg1: memref<32x64xf32, #tpu.memory_space<vmem>>, %arg2: memref<2x64xf32, #tpu.memory_space<vmem>>, %arg3: memref<64x32xf32, #tpu.memory_space<vmem>>, %arg4: memref<1x32xf32, #tpu.memory_space<vmem>>, %arg5: memref<8x32xf32, #tpu.memory_space<vmem>>) attributes {dimension_semantics = [], scalar_prefetch = 0 : i64, scratch_operands = 0 : i64, tpu.core_type = #tpu.core_type<tc>} {
    %c0 = arith.constant 0 : index
    %c0_0 = arith.constant 0 : index
    %0 = vector.load %arg0[%c0, %c0_0] : memref<8x32xf32, #tpu.memory_space<vmem>>, vector<8x32xf32>
    %c0_1 = arith.constant 0 : index
    %c0_2 = arith.constant 0 : index
    %1 = vector.load %arg1[%c0_1, %c0_2] : memref<32x64xf32, #tpu.memory_space<vmem>>, vector<32x64xf32>
    %cst = arith.constant dense<0.000000e+00> : vector<8x64xf32>
    %2 = tpu.matmul %0, %1, %cst {dimension_numbers = #tpu.dot_dimension_numbers<[1], [0], [0], [1], [0, 0, 1, 1], [], []>} : vector<8x32xf32>, vector<32x64xf32>, vector<8x64xf32> -> vector<8x64xf32>
    %cst_3 = arith.constant dense<0.000000e+00> : vector<64xf32>
    %3 = vector.multi_reduction <add>, %2, %cst_3 [0] : vector<8x64xf32> to vector<64xf32>
    %4 = vector.shape_cast %3 : vector<64xf32> to vector<1x64xf32>
    %cst_4 = arith.constant 8.000000e+00 : f32
    %5 = vector.broadcast %cst_4 : f32 to vector<1x64xf32>
    %6 = arith.divf %4, %5 : vector<1x64xf32>
    %7 = vector.broadcast %6 : vector<1x64xf32> to vector<8x64xf32>
    %8 = arith.subf %2, %7 : vector<8x64xf32>
    %9 = arith.mulf %8, %8 : vector<8x64xf32>
    %cst_5 = arith.constant dense<0.000000e+00> : vector<64xf32>
    %10 = vector.multi_reduction <add>, %9, %cst_5 [0] : vector<8x64xf32> to vector<64xf32>
    %11 = vector.shape_cast %10 : vector<64xf32> to vector<1x64xf32>
    %cst_6 = arith.constant 8.000000e+00 : f32
    %12 = vector.broadcast %cst_6 : f32 to vector<1x64xf32>
    %13 = arith.divf %11, %12 : vector<1x64xf32>
    %c0_7 = arith.constant 0 : index
    %c0_8 = arith.constant 0 : index
    %14 = vector.load %arg2[%c0_7, %c0_8] : memref<2x64xf32, #tpu.memory_space<vmem>>, vector<1x64xf32>
    %c1 = arith.constant 1 : index
    %c0_9 = arith.constant 0 : index
    %15 = vector.load %arg2[%c1, %c0_9] : memref<2x64xf32, #tpu.memory_space<vmem>>, vector<1x64xf32>
    %cst_10 = arith.constant 9.99999974E-6 : f32
    %16 = vector.broadcast %cst_10 : f32 to vector<1x64xf32>
    %17 = arith.addf %13, %16 : vector<1x64xf32>
    %18 = math.rsqrt %17 : vector<1x64xf32>
    %19 = arith.mulf %14, %18 : vector<1x64xf32>
    %20 = arith.mulf %6, %19 : vector<1x64xf32>
    %21 = arith.subf %15, %20 : vector<1x64xf32>
    %22 = vector.broadcast %19 : vector<1x64xf32> to vector<8x64xf32>
    %23 = arith.mulf %2, %22 : vector<8x64xf32>
    %24 = vector.broadcast %21 : vector<1x64xf32> to vector<8x64xf32>
    %25 = arith.addf %23, %24 : vector<8x64xf32>
    %cst_11 = arith.constant 0.000000e+00 : f32
    %26 = vector.broadcast %cst_11 : f32 to vector<8x64xf32>
    %27 = arith.maximumf %25, %26 : vector<8x64xf32>
    %c0_12 = arith.constant 0 : index
    %c0_13 = arith.constant 0 : index
    %28 = vector.load %arg3[%c0_12, %c0_13] : memref<64x32xf32, #tpu.memory_space<vmem>>, vector<64x32xf32>
    %cst_14 = arith.constant dense<0.000000e+00> : vector<8x32xf32>
    %29 = tpu.matmul %27, %28, %cst_14 {dimension_numbers = #tpu.dot_dimension_numbers<[1], [0], [0], [1], [0, 0, 1, 1], [], []>} : vector<8x64xf32>, vector<64x32xf32>, vector<8x32xf32> -> vector<8x32xf32>
    %c0_15 = arith.constant 0 : index
    %c0_16 = arith.constant 0 : index
    %30 = vector.load %arg4[%c0_15, %c0_16] : memref<1x32xf32, #tpu.memory_space<vmem>>, vector<1x32xf32>
    %31 = vector.broadcast %30 : vector<1x32xf32> to vector<8x32xf32>
    %32 = arith.addf %29, %31 : vector<8x32xf32>
    %c0_17 = arith.constant 0 : index
    %c0_18 = arith.constant 0 : index
    %33 = vector.load %arg5[%c0_17, %c0_18] : memref<8x32xf32, #tpu.memory_space<vmem>>, vector<8x32xf32>
    tpu.vector_store %arg5[%c0_17, %c0_18], %32 {strides = array<i32>} : memref<8x32xf32, #tpu.memory_space<vmem>>, vector<8x32xf32>,
    return
  }
}

</mosaic_0001>

<llo_original>
// kernel: soda_mlp_forward.1
$region0: #{soda_mlp_forward.1}
  #allocation0 [shape = 'u32[]', space=smem, size = 0x4, offset = 0x4, fixed_abs, tag = 'smem constant byte address 0x4 - core index']
  #allocation1 [shape = 'u32[144,128]{1,0:T(1,128)}', space=vmem, size = 0x12000, scoped, tag = 'internal scratch']
  %s0 = inlined_call_operand.vmem [shape: f32[8,32], index: 0, kind: input, shape index: {}]
  %s1 = inlined_call_operand.vmem [shape: f32[32,64], index: 1, kind: input, shape index: {}]
  %s2 = inlined_call_operand.vmem [shape: f32[2,64], index: 2, kind: input, shape index: {}]
  %s3 = inlined_call_operand.vmem [shape: f32[64,32], index: 3, kind: input, shape index: {}]
  %s4 = inlined_call_operand.vmem [shape: f32[1,32], index: 4, kind: input, shape index: {}]
  %s5 = inlined_call_operand.hbm [shape: f32[8,32], index: 5, kind: output, shape index: {}]
  %s6 = sld [smem:[#allocation0]]
  $region30: #{soda_mlp_forward.1} parent=0
    _
  %s8 = ssub.s32 1, %s6
  %s9 = scalar_select 0, %s8, %s6
  $region1: #{soda_mlp_forward.1} parent=0
    #allocation2 [shape = 'u8[4096]{0}', space=vmem, size = 0x1000, scoped, tag = 'output window, operand 0, single buffered']
    #allocation3 [shape = 's32[1]{0}', space=sflag, size = 0x4, scoped, tag = 'scoped memory for soda_mlp_forward.1']
    %10 = vsyncpa [#allocation3], 0
    // Predicated region
    $region2: #{soda_mlp_forward.1} parent=1 // pred_check
      _
    $region3: #{soda_mlp_forward.1} parent=1 // pred_check_branch
      %12 = sbr.rel (0) target = $region5
    $region4: #{soda_mlp_forward.1} parent=1 // pred_region
      _
    $region5: #{soda_mlp_forward.1} parent=1 // pred_fallthru
      _
    // Predicated region
    $region6: #{soda_mlp_forward.1} parent=1 // pred_check
      _
    $region7: #{soda_mlp_forward.1} parent=1 // pred_check_branch
      %14 = sbr.rel (0) target = $region9
    $region8: #{soda_mlp_forward.1} parent=1 // pred_region
      _
    $region9: #{soda_mlp_forward.1} parent=1 // pred_fallthru
      _
    // Predicated region
    $region10: #{soda_mlp_forward.1} parent=1 // pred_check
      _
    $region11: #{soda_mlp_forward.1} parent=1 // pred_check_branch
      %16 = sbr.rel (0) target = $region13
    $region12: #{soda_mlp_forward.1} parent=1 // pred_region
      _
    $region13: #{soda_mlp_forward.1} parent=1 // pred_fallthru
      _
    // Predicated region
    $region14: #{soda_mlp_forward.1} parent=1 // pred_check
      _
    $region15: #{soda_mlp_forward.1} parent=1 // pred_check_branch
      %18 = sbr.rel (0) target = $region17
    $region16: #{soda_mlp_forward.1} parent=1 // pred_region
      _
    $region17: #{soda_mlp_forward.1} parent=1 // pred_fallthru
      _
    // Predicated region
    $region18: #{soda_mlp_forward.1} parent=1 // pred_check
      _
    $region19: #{soda_mlp_forward.1} parent=1 // pred_check_branch
      %20 = sbr.rel (0) target = $region21
    $region20: #{soda_mlp_forward.1} parent=1 // pred_region
      _
    $region21: #{soda_mlp_forward.1} parent=1 // pred_fallthru
      _
    %v21 = vld [vmem:[%s0] sm:$0xff]
    %v22 = vld [vmem:[%s1] sm:$0xff]
    %v23 = vld [vmem:[%s1 + $0x8] sm:$0xff]
    %v24 = vld [vmem:[%s1 + $0x10] sm:$0xff]
    %v25 = vld [vmem:[%s1 + $0x18] sm:$0xff]
    %vm26 = vcmask 261120
    %v28 = vsel %vm26, %v21, 0
    %30 = vmatprep.subr.mxu0 0.0
    %31 = vmatpush1.msra.mxu0 %v22
    %32 = vmatprep.subr.mxu0 0.0
    %33 = vmatpush1.msra.mxu0 %v23
    %34 = vmatprep.subr.mxu0 0.0
    %35 = vmatpush1.msra.mxu0 %v24
    %36 = vmatprep.subr.mxu0 0.0
    %37 = vmatpush1.msra.mxu0 %v25
    %38 = vmatprep.subr.mxu0 0.0
    %39 = vmatpush1.msra.mxu0 0.0
    %40 = vmatprep.subr.mxu0 0.0
    %41 = vmatpush1.msra.mxu0 0.0
    %42 = vmatprep.subr.mxu0 0.0
    %43 = vmatpush1.msra.mxu0 0.0
    %44 = vmatprep.subr.mxu0 0.0
    %45 = vmatpush1.msra.mxu0 0.0
    %46 = vmatprep.subr.mxu0 0.0
    %47 = vmatpush1.msra.mxu0 0.0
    %48 = vmatprep.subr.mxu0 0.0
    %49 = vmatpush1.msra.mxu0 0.0
    %50 = vmatprep.subr.mxu0 0.0
    %51 = vmatpush1.msra.mxu0 0.0
    %52 = vmatprep.subr.mxu0 0.0
    %53 = vmatpush1.msra.mxu0 0.0
    %54 = vmatprep.subr.mxu0 0.0
    %55 = vmatpush1.msra.mxu0 0.0
    %56 = vmatprep.subr.mxu0 0.0
    %57 = vmatpush1.msra.mxu0 0.0
    %58 = vmatprep.subr.mxu0 0.0
    %59 = vmatpush1.msra.mxu0 0.0
    %60 = vmatprep.subr.mxu0 0.0
    %61 = vmatpush1.msra.mxu0 0.0
    %62 = vmatprep.subr.mxu0 0.0
    %63 = vmatpush1.msra.mxu0 0.0
    %64 = vmatprep.subr.mxu0 0.0
    %65 = vmatpush1.msra.mxu0 0.0
    %66 = vmatprep.subr.mxu0 0.0
    %67 = vmatpush1.msra.mxu0 0.0
    %68 = vmatprep.subr.mxu0 0.0
    %69 = vmatpush1.msra.mxu0 0.0
    %70 = vmatprep.subr.mxu0 0.0
    %71 = vmatpush1.msra.mxu0 0.0
    %72 = vmatprep.subr.mxu0 0.0
    %73 = vmatpush1.msra.mxu0 0.0
    %74 = vmatprep.subr.mxu0 0.0
    %75 = vmatpush1.msra.mxu0 0.0
    %76 = vmatprep.subr.mxu0 0.0
    %77 = vmatpush1.msra.mxu0 0.0
    %78 = vmatprep.subr.mxu0 0.0
    %79 = vmatpush1.msra.mxu0 0.0
    %80 = vmatprep.subr.mxu0 0.0
    %81 = vmatpush1.msra.mxu0 0.0
    %82 = vmatprep.subr.mxu0 0.0
    %83 = vmatpush1.msra.mxu0 0.0
    %84 = vmatprep.subr.mxu0 0.0
    %85 = vmatpush1.msra.mxu0 0.0
    %86 = vmatprep.subr.mxu0 0.0
    %87 = vmatpush1.msra.mxu0 0.0
    %88 = vmatprep.subr.mxu0 0.0
    %89 = vmatpush1.msra.mxu0 0.0
    %90 = vmatprep.subr.mxu0 0.0
    %91 = vmatpush1.msra.mxu0 0.0
    %92 = vmatprep.subr.mxu0 0.0
    %93 = vmatpush1.msra.mxu0 0.0
    %94 = vmatprep.mubr.f32.mxu0 0.0
    %95 = vmatmul.mubr.f32.gmra.mrb[0].mxu0 %v28
    %v96 = vpop.f32.mrb[0].mxu0
    %v97 = vadd.f32 0.0, %v96
    %v98 = vpop.f32.mrb[0].mxu0
    %99 = vdwg.mxu0
    %vm100 = vcmask 523264
    %v101 = vsel %vm100, %v97, 0.0
    %v102 = vrot.slane %v101, 4
    %v103 = vadd.f32 %v101, %v102
    %v104 = vrot.slane %v103, 2
    %v105 = vadd.f32 %v103, %v104
    %v106 = vrot.slane %v105, 1
    %v107 = vadd.f32 %v105, %v106
    %v108 = vrcp.pop 8.0
    %v109 = vmul.f32 %v107, %v108
    %v110 = vsub.f32 %v97, %v109
    %v111 = vmul.f32 %v110, %v110
    %v112 = vsel %vm100, %v111, 0.0
    %v113 = vrot.slane %v112, 4
    %v114 = vadd.f32 %v112, %v113
    %v115 = vrot.slane %v114, 2
    %v116 = vadd.f32 %v114, %v115
    %v117 = vrot.slane %v116, 1
    %v118 = vadd.f32 %v116, %v117
    %v119 = vmul.f32 %v118, %v108
    %v120 = vld [vmem:[%s2] sm:$0x1]
    %v121 = vld [vmem:[%s2 + $0x1] sm:$0x1]
    %v122 = vadd.f32 %v119, 1e-05
    %v123 = vrsqrt.pop %v122
    %v124 = vmul.f32 %v120, %v123
    %v125 = vmul.f32 %v109, %v124
    %v126 = vsub.f32 %v121, %v125
    %v127 = vlaneseq
    %v128 = vshrl.u32 %v127, 7
    %v129 = vsub.s32 0, %v128
    %v130 = vrot.slane %v124, %v129
    %v131 = vmul.f32 %v97, %v130
    %v132 = vlaneseq
    %v133 = vshrl.u32 %v132, 7
    %v134 = vsub.s32 0, %v133
    %v135 = vrot.slane %v126, %v134
    %v136 = vadd.f32 %v131, %v135
    %v137 = vmax.f32 %v136, 0.0
    %v138 = vld [vmem:[%s3] sm:$0xff]
    %v139 = vld [vmem:[%s3 + $0x8] sm:$0xff]
    %v140 = vld [vmem:[%s3 + $0x10] sm:$0xff]
    %v141 = vld [vmem:[%s3 + $0x18] sm:$0xff]
    %v142 = vld [vmem:[%s3 + $0x20] sm:$0xff]
    %v143 = vld [vmem:[%s3 + $0x28] sm:$0xff]
    %v144 = vld [vmem:[%s3 + $0x30] sm:$0xff]
    %v145 = vld [vmem:[%s3 + $0x38] sm:$0xff]
    %v146 = vld [vmem:[%s4] sm:$0x1]
    %v148 = vlaneseq
    %v149 = vshrl.u32 %v148, 7
    %v150 = vsub.s32 0, %v149
    %v151 = vrot.slane %v146, %v150
    %v154 = vsel %vm100, %v137, 0
    %156 = vmatprep.subr.mxu0 0.0
    %157 = vmatpush1.msra.mxu0 %v138
    %158 = vmatprep.subr.mxu0 0.0
    %159 = vmatpush1.msra.mxu0 %v139
    %160 = vmatprep.subr.mxu0 0.0
    %161 = vmatpush1.msra.mxu0 %v140
    %162 = vmatprep.subr.mxu0 0.0
    %163 = vmatpush1.msra.mxu0 %v141
    %164 = vmatprep.subr.mxu0 0.0
    %165 = vmatpush1.msra.mxu0 %v142
    %166 = vmatprep.subr.mxu0 0.0
    %167 = vmatpush1.msra.mxu0 %v143
    %168 = vmatprep.subr.mxu0 0.0
    %169 = vmatpush1.msra.mxu0 %v144
    %170 = vmatprep.subr.mxu0 0.0
    %171 = vmatpush1.msra.mxu0 %v145
    %172 = vmatprep.subr.mxu0 0.0
    %173 = vmatpush1.msra.mxu0 0.0
    %174 = vmatprep.subr.mxu0 0.0
    %175 = vmatpush1.msra.mxu0 0.0
    %176 = vmatprep.subr.mxu0 0.0
    %177 = vmatpush1.msra.mxu0 0.0
    %178 = vmatprep.subr.mxu0 0.0
    %179 = vmatpush1.msra.mxu0 0.0
    %180 = vmatprep.subr.mxu0 0.0
    %181 = vmatpush1.msra.mxu0 0.0
    %182 = vmatprep.subr.mxu0 0.0
    %183 = vmatpush1.msra.mxu0 0.0
    %184 = vmatprep.subr.mxu0 0.0
    %185 = vmatpush1.msra.mxu0 0.0
    %186 = vmatprep.subr.mxu0 0.0
    %187 = vmatpush1.msra.mxu0 0.0
    %188 = vmatprep.subr.mxu0 0.0
    %189 = vmatpush1.msra.mxu0 0.0
    %190 = vmatprep.subr.mxu0 0.0
    %191 = vmatpush1.msra.mxu0 0.0
    %192 = vmatprep.subr.mxu0 0.0
    %193 = vmatpush1.msra.mxu0 0.0
    %194 = vmatprep.subr.mxu0 0.0
    %195 = vmatpush1.msra.mxu0 0.0
    %196 = vmatprep.subr.mxu0 0.0
    %197 = vmatpush1.msra.mxu0 0.0
    %198 = vmatprep.subr.mxu0 0.0
    %199 = vmatpush1.msra.mxu0 0.0
    %200 = vmatprep.subr.mxu0 0.0
    %201 = vmatpush1.msra.mxu0 0.0
    %202 = vmatprep.subr.mxu0 0.0
    %203 = vmatpush1.msra.mxu0 0.0
    %204 = vmatprep.subr.mxu0 0.0
    %205 = vmatpush1.msra.mxu0 0.0
    %206 = vmatprep.subr.mxu0 0.0
    %207 = vmatpush1.msra.mxu0 0.0
    %208 = vmatprep.subr.mxu0 0.0
    %209 = vmatpush1.msra.mxu0 0.0
    %210 = vmatprep.subr.mxu0 0.0
    %211 = vmatpush1.msra.mxu0 0.0
    %212 = vmatprep.subr.mxu0 0.0
    %213 = vmatpush1.msra.mxu0 0.0
    %214 = vmatprep.subr.mxu0 0.0
    %215 = vmatpush1.msra.mxu0 0.0
    %216 = vmatprep.subr.mxu0 0.0
    %217 = vmatpush1.msra.mxu0 0.0
    %218 = vmatprep.subr.mxu0 0.0
    %219 = vmatpush1.msra.mxu0 0.0
    %220 = vmatprep.mubr.f32.mxu0 0.0
    %221 = vmatmul.mubr.f32.gmra.mrb[0].mxu0 %v154
    %v222 = vpop.f32.mrb[0].mxu0
    %v223 = vadd.f32 %v151, %v222
    %v224 = vpop.f32.mrb[0].mxu0
    %225 = vdwg.mxu0
    %226 = vst.msk [vmem:[#allocation2] sm:$0xff] %vm26, %v223
    // Predicated region
    $region22: #{soda_mlp_forward.1} parent=1 // pred_check
      _
    $region23: #{soda_mlp_forward.1} parent=1 // pred_check_branch
      %228 = sbr.rel (0) target = $region25
    $region24: #{soda_mlp_forward.1} parent=1 // pred_region
      %s230 = ssub.s32 128, 128
      %231 = vsyncadd [#allocation3], %s230
      %s233 = sshll.u32 [#allocation2], 4
      %s234 = int_to_ptr.vmem [resolvable:$true] %s233
      %236 = dma.vmem_to_hbm [thread:$0]  %s234, 128, %s5, [#allocation3]
    $region25: #{soda_mlp_forward.1} parent=1 // pred_fallthru
      _
    // Predicated region
    $region26: #{soda_mlp_forward.1} parent=1 // pred_check
      _
    $region27: #{soda_mlp_forward.1} parent=1 // pred_check_branch
      %238 = sbr.rel (0) target = $region29
    $region28: #{soda_mlp_forward.1} parent=1 // pred_region
      %239 = dma.done [#allocation3], 128
    $region29: #{soda_mlp_forward.1} parent=1 // pred_fallthru
      _
    %240 = vsyncpa [#allocation3], 1

</llo_original>
